<compile_context>
chip_gen: v7x
topology: tpu7x:2x2x1
jax: 0.10.0
libtpu: 0.0.40
codegen_flags: <defaults>
</compile_context>

<pallas_src>
import functools

import jax
import jax.numpy as jnp
from jax.experimental import pallas as pl
from jax.experimental.pallas import tpu as pltpu


def _round_up(x: int, m: int) -> int:
    return (x + m - 1) // m * m


def _vmem_capacity_bytes() -> int:
    """Per-TensorCore VMEM capacity; conservative fallback (v7x = 64 MiB)."""
    try:
        info = pltpu.get_tpu_info()
        cap = getattr(info, "vmem_capacity_bytes", None)
        if cap:
            return int(cap)
    except Exception:
        pass
    return 64 * 1024 * 1024


def _center_loss_kernel(labels_ref, feat_ref, cent_ref, out_ref, acc_ref, *,
                        batch_size):
    # labels_ref: (TB, 1)  int32  VMEM  (tail rows may hold garbage -> masked)
    # feat_ref:   (TB, D)  native VMEM  (one batch tile, un-padded D)
    # cent_ref:   (CK, D)  native VMEM  (one class chunk; resident if CK == C)
    # out_ref:    (1, 1)   f32    SMEM  per-batch-tile partial sum of squares
    # acc_ref:    (TB, D)  f32    VMEM scratch: gathered batch centers
    i = pl.program_id(0)          # batch tile
    k = pl.program_id(1)          # class chunk (reduction axis)
    nk = pl.num_programs(1)

    tb = feat_ref.shape[0]
    ck = cent_ref.shape[0]

    labels = labels_ref[...]                                    # (TB, 1)
    centers = cent_ref[...]                                     # (CK, D)

    # Row gather of this class chunk via one-hot matmul on the MXU.  0/1 are
    # exact in bf16 and accumulation is f32, so each accumulated row equals the
    # selected center row exactly.  A label outside this chunk matches nothing.
    class_ids = k * ck + jax.lax.broadcasted_iota(jnp.int32, (tb, ck), 1)
    one_hot = (class_ids == labels).astype(centers.dtype)       # (TB, CK)
    partial_centers = jnp.dot(one_hot, centers,
                              preferred_element_type=jnp.float32)  # (TB, D) f32

    @pl.when(k == 0)
    def _():
        acc_ref[...] = partial_centers

    @pl.when(k > 0)
    def _():
        acc_ref[...] += partial_centers

    @pl.when(k == nk - 1)
    def _():
        feat = feat_ref[...].astype(jnp.float32)                 # (TB, D)
        diff = feat - acc_ref[...]
        per_row = jnp.sum(diff * diff, axis=-1, keepdims=True)   # (TB, 1)
        # Mask the batch tail: rows past the real batch read out-of-bounds
        # data (we deliberately do NOT pad features in HBM); zero them here.
        row_ids = i * tb + jax.lax.broadcasted_iota(jnp.int32, (tb, 1), 0)
        per_row = jnp.where(row_ids < batch_size, per_row, 0.0)
        out_ref[0, 0] = jnp.sum(per_row)


def center_loss(features, labels, centers, *, block_rows: int = 512,
                class_chunk: int = 512):
    """features: (B, D), labels: (B,) int, centers: (C, D) -> scalar f32 loss.

    Matches PyTorch: 0.5 * (features - centers[labels]).pow(2).sum() / B.
    NOTE: out-of-range labels silently select a zero center instead of raising
    like PyTorch advanced indexing would.
    """
    B, D = features.shape
    C, Dc = centers.shape
    assert D == Dc, (D, Dc)

    labels = labels.astype(jnp.int32).reshape(B, 1)

    # Class chunking: keep centers fully resident when small (constant block
    # index -> single DMA), otherwise sweep (CK, D) chunks on an inner grid
    # axis so VMEM footprint and per-step MXU work stay bounded.
    if C <= class_chunk:
        CK, C_pad = C, C
    else:
        CK = class_chunk                       # multiple of 8 (and 128)
        C_pad = _round_up(C, CK)
        # Centers are small relative to features; zero rows are never selected.
        centers = jnp.pad(centers, ((0, C_pad - C), (0, 0)))
    num_cchunks = C_pad // CK

    feat_itemsize = jnp.dtype(features.dtype).itemsize
    cent_itemsize = jnp.dtype(centers.dtype).itemsize
    # Sublane packing multiple for the feature dtype (8 f32 / 16 bf16 / 32 i8).
    mult = {4: 8, 2: 16, 1: 32}.get(feat_itemsize, 8)

    vmem_cap = _vmem_capacity_bytes()
    budget = int(vmem_cap * 0.55)              # conservative: fits v7x 64 MiB

    def vmem_est(tb: int) -> int:
        return (
            2 * tb * D * feat_itemsize         # double-buffered feature tiles
            + 2 * tb * 128 * 4                 # label tiles (lane-padded i32)
            + 2 * CK * D * cent_itemsize       # centers chunk (double-buffered)
            + tb * CK * (4 + cent_itemsize)    # iota + one-hot intermediates
            + 3 * tb * D * 4                   # f32 feat / gathered / diff
            + tb * D * 4                       # batch-centers accumulator
        )

    TB = _round_up(min(block_rows, _round_up(B, mult)), mult)
    while TB > mult and vmem_est(TB) > budget:
        TB = _round_up(max(TB // 2, mult), mult)
    num_btiles = pl.cdiv(B, TB)

    # Explicit VMEM limit: sized from the estimate (not clamped to the full
    # physical VMEM) with headroom for compiler-internal scratch.
    vmem_limit = int(min(max(2 * vmem_est(TB), 16 * 1024 * 1024),
                         int(vmem_cap * 0.85)))

    kernel = functools.partial(_center_loss_kernel, batch_size=B)

    partials = pl.pallas_call(
        kernel,
        out_shape=jax.ShapeDtypeStruct((num_btiles, 1), jnp.float32),
        grid=(num_btiles, num_cchunks),
        in_specs=[
            pl.BlockSpec((TB, 1), lambda i, k: (i, 0)),   # labels tile
            pl.BlockSpec((TB, D), lambda i, k: (i, 0)),   # features tile (un-padded D)
            pl.BlockSpec((CK, D), lambda i, k: (k, 0)),   # centers chunk
        ],
        out_specs=pl.BlockSpec((1, 1), lambda i, k: (i, 0),
                               memory_space=pltpu.MemorySpace.SMEM),
        scratch_shapes=[pltpu.VMEM((TB, D), jnp.float32)],
        compiler_params=pltpu.CompilerParams(
            dimension_semantics=("parallel", "arbitrary"),
            vmem_limit_bytes=vmem_limit,
        ),
    )(labels, features, centers)

    # Tiny final reduction + 0.5/B scale outside the kernel (scalar work).
    return 0.5 * jnp.sum(partials) / jnp.float32(B)


if __name__ == "__main__":
    key = jax.random.PRNGKey(0)
    k_feat, k_centers, k_labels = jax.random.split(key, 3)

    B = 8
    num_classes = 16
    feat_dim = 32

    features = jax.random.normal(k_feat, (B, feat_dim), dtype=jnp.float32)
    # Matches the nn.Parameter(torch.randn(num_classes, feat_dim)) shape.
    centers = jax.random.normal(k_centers, (num_classes, feat_dim),
                                dtype=jnp.float32)
    labels = jax.random.randint(k_labels, (B,), 0, num_classes, dtype=jnp.int32)

    loss = center_loss(features, labels, centers)
    jax.block_until_ready(loss)

    # Pure-JAX reference check.
    ref = 0.5 * jnp.sum((features - centers[labels]) ** 2) / B
    assert jnp.allclose(loss, ref, rtol=1e-5, atol=1e-5), (loss, ref)

    print("KERNEL_OK")
</pallas_src>

<mosaic_0001>
module attributes {stable_mosaic.version = 11 : i64} {
  func.func @_center_loss_kernel(%arg0: i32, %arg1: i32, %arg2: memref<8x1xi32, #tpu.memory_space<vmem>>, %arg3: memref<8x32xf32, #tpu.memory_space<vmem>>, %arg4: memref<16x32xf32, #tpu.memory_space<vmem>>, %arg5: memref<1x1xf32, #tpu.memory_space<smem>>, %arg6: memref<8x32xf32, #tpu.memory_space<vmem>>) attributes {dimension_semantics = [#tpu.dimension_semantics<parallel>, #tpu.dimension_semantics<arbitrary>], iteration_bounds = array<i64: 1, 1>, scalar_prefetch = 0 : i64, scratch_operands = 1 : i64, tpu.core_type = #tpu.core_type<tc>, window_params = [{transform_indices = @transform_0, window_bounds = array<i64: 8, 1>}, {transform_indices = @transform_1, window_bounds = array<i64: 8, 32>}, {transform_indices = @transform_2, window_bounds = array<i64: 16, 32>}, {transform_indices = @transform_3, window_bounds = array<i64: 1, 1>}]} {
    %c0 = arith.constant 0 : index
    %c0_0 = arith.constant 0 : index
    %0 = vector.load %arg2[%c0, %c0_0] : memref<8x1xi32, #tpu.memory_space<vmem>>, vector<8x1xi32>
    %c0_1 = arith.constant 0 : index
    %c0_2 = arith.constant 0 : index
    %1 = vector.load %arg4[%c0_1, %c0_2] : memref<16x32xf32, #tpu.memory_space<vmem>>, vector<16x32xf32>
    %c16_i32 = arith.constant 16 : i32
    %2 = arith.muli %arg1, %c16_i32 : i32
    %3 = tpu.iota {dimensions = array<i32: 1>} : vector<8x16xi32>
    %4 = vector.broadcast %2 : i32 to vector<8x16xi32>
    %5 = arith.addi %4, %3 : vector<8x16xi32>
    %6 = vector.broadcast %0 : vector<8x1xi32> to vector<8x16xi32>
    %7 = arith.cmpi eq, %5, %6 : vector<8x16xi32>
    %8 = arith.extui %7 : vector<8x16xi1> to vector<8x16xi32>
    %9 = arith.sitofp %8 : vector<8x16xi32> to vector<8x16xf32>
    %cst = arith.constant dense<0.000000e+00> : vector<8x32xf32>
    %10 = tpu.matmul %9, %1, %cst {dimension_numbers = #tpu.dot_dimension_numbers<[1], [0], [0], [1], [0, 0, 1, 1], [], []>} : vector<8x16xf32>, vector<16x32xf32>, vector<8x32xf32> -> vector<8x32xf32>
    %c0_i32 = arith.constant 0 : i32
    %11 = arith.cmpi eq, %arg1, %c0_i32 : i32
    %12 = arith.extui %11 : i1 to i32
    %c0_i32_3 = arith.constant 0 : i32
    %13 = arith.cmpi ne, %12, %c0_i32_3 : i32
    scf.if %13 {
      %c0_8 = arith.constant 0 : index
      %c0_9 = arith.constant 0 : index
      %20 = vector.load %arg6[%c0_8, %c0_9] : memref<8x32xf32, #tpu.memory_space<vmem>>, vector<8x32xf32>
      tpu.vector_store %arg6[%c0_8, %c0_9], %10 {strides = array<i32>} : memref<8x32xf32, #tpu.memory_space<vmem>>, vector<8x32xf32>,
    } else {
    }
    %c0_i32_4 = arith.constant 0 : i32
    %14 = arith.cmpi sgt, %arg1, %c0_i32_4 : i32
    %15 = arith.extui %14 : i1 to i32
    %c0_i32_5 = arith.constant 0 : i32
    %16 = arith.cmpi ne, %15, %c0_i32_5 : i32
    scf.if %16 {
      %c0_8 = arith.constant 0 : index
      %c0_9 = arith.constant 0 : index
      %20 = vector.load %arg6[%c0_8, %c0_9] : memref<8x32xf32, #tpu.memory_space<vmem>>, vector<8x32xf32>
      %21 = arith.addf %20, %10 : vector<8x32xf32>
      %c0_10 = arith.constant 0 : index
      %c0_11 = arith.constant 0 : index
      %22 = vector.load %arg6[%c0_10, %c0_11] : memref<8x32xf32, #tpu.memory_space<vmem>>, vector<8x32xf32>
      tpu.vector_store %arg6[%c0_10, %c0_11], %21 {strides = array<i32>} : memref<8x32xf32, #tpu.memory_space<vmem>>, vector<8x32xf32>,
    } else {
    }
    %c0_i32_6 = arith.constant 0 : i32
    %17 = arith.cmpi eq, %arg1, %c0_i32_6 : i32
    %18 = arith.extui %17 : i1 to i32
    %c0_i32_7 = arith.constant 0 : i32
    %19 = arith.cmpi ne, %18, %c0_i32_7 : i32
    scf.if %19 {
      %c0_8 = arith.constant 0 : index
      %c0_9 = arith.constant 0 : index
      %20 = vector.load %arg3[%c0_8, %c0_9] : memref<8x32xf32, #tpu.memory_space<vmem>>, vector<8x32xf32>
      %c0_10 = arith.constant 0 : index
      %c0_11 = arith.constant 0 : index
      %21 = vector.load %arg6[%c0_10, %c0_11] : memref<8x32xf32, #tpu.memory_space<vmem>>, vector<8x32xf32>
      %22 = arith.subf %20, %21 : vector<8x32xf32>
      %23 = arith.mulf %22, %22 : vector<8x32xf32>
      %cst_12 = arith.constant dense<0.000000e+00> : vector<8xf32>
      %24 = vector.multi_reduction <add>, %23, %cst_12 [1] : vector<8x32xf32> to vector<8xf32>
      %25 = vector.shape_cast %24 : vector<8xf32> to vector<8x1xf32>
      %c8_i32 = arith.constant 8 : i32
      %26 = arith.muli %arg0, %c8_i32 : i32
      %27 = tpu.iota {dimensions = array<i32: 0>} : vector<8x1xi32>
      %28 = vector.broadcast %26 : i32 to vector<8x1xi32>
      %29 = arith.addi %28, %27 : vector<8x1xi32>
      %c8_i32_13 = arith.constant 8 : i32
      %30 = vector.broadcast %c8_i32_13 : i32 to vector<8x1xi32>
      %31 = arith.cmpi slt, %29, %30 : vector<8x1xi32>
      %cst_14 = arith.constant 0.000000e+00 : f32
      %32 = vector.broadcast %cst_14 : f32 to vector<8x1xf32>
      %33 = arith.select %31, %25, %32 : vector<8x1xi1>, vector<8x1xf32>
      %34 = vector.shape_cast %33 : vector<8x1xf32> to vector<1x8x1xf32>
      %cst_15 = arith.constant dense<0.000000e+00> : vector<1xf32>
      %35 = vector.multi_reduction <add>, %34, %cst_15 [1, 2] : vector<1x8x1xf32> to vector<1xf32>
      %36 = vector.shape_cast %35 : vector<1xf32> to vector<1x1x1xf32>
      %37 = vector.extract %36[0, 0, 0] : f32 from vector<1x1x1xf32>
      %c0_16 = arith.constant 0 : index
      %c0_17 = arith.constant 0 : index
      %38 = memref.load %arg5[%c0_16, %c0_17] : memref<1x1xf32, #tpu.memory_space<smem>>
      memref.store %37, %arg5[%c0_16, %c0_17] : memref<1x1xf32, #tpu.memory_space<smem>>
    } else {
    }
    return
  }
  func.func @transform_0(%arg0: i32, %arg1: i32) -> (i32, i32) {
    %c0_i32 = arith.constant 0 : i32
    %c0_i32_0 = arith.constant 0 : i32
    return %arg0, %c0_i32 : i32, i32
  }
  func.func @transform_1(%arg0: i32, %arg1: i32) -> (i32, i32) {
    %c0_i32 = arith.constant 0 : i32
    %c0_i32_0 = arith.constant 0 : i32
    return %arg0, %c0_i32 : i32, i32
  }
  func.func @transform_2(%arg0: i32, %arg1: i32) -> (i32, i32) {
    %c0_i32 = arith.constant 0 : i32
    %c0_i32_0 = arith.constant 0 : i32
    return %arg1, %c0_i32 : i32, i32
  }
  func.func @transform_3(%arg0: i32, %arg1: i32) -> (i32, i32) {
    %c0_i32 = arith.constant 0 : i32
    %c0_i32_0 = arith.constant 0 : i32
    return %arg0, %c0_i32 : i32, i32
  }
}

</mosaic_0001>

<llo_original>
// kernel: tpu_custom_call.1
$region0: #{tpu_custom_call.1}
  #allocation0 [shape = 'u32[]', space=smem, size = 0x4, offset = 0x4, fixed_abs, tag = 'smem constant byte address 0x4 - core index']
  #allocation1 [shape = 'u32[144,128]{1,0:T(1,128)}', space=vmem, size = 0x12000, scoped, tag = 'internal scratch']
  #allocation2 [shape = 'f32[8,32]{1,0:T(8,128)}', space=vmem, size = 0x1000, scoped, tag = 'scratch operand']
  %s0 = inlined_call_operand.vmem [shape: s32[8,1], index: 0, kind: input, shape index: {}]
  %s1 = inlined_call_operand.hbm [shape: f32[8,32], index: 1, kind: input, shape index: {}]
  %s2 = inlined_call_operand.vmem [shape: f32[16,32], index: 2, kind: input, shape index: {}]
  %s3 = inlined_call_operand.hbm [shape: f32[1,1], index: 3, kind: output, shape index: {}]
  %s4 = sld [smem:[#allocation0]]
  $region38: #{tpu_custom_call.1} parent=0
    _
  %s6 = ssub.s32 1, %s4
  %s7 = scalar_select 0, %s6, %s4
  $region1: #{tpu_custom_call.1} parent=0
    #allocation3 [shape = 'u8[4096]{0}', space=vmem, size = 0x1000, scoped, tag = 'input window, operand 1, single buffered']
    #allocation4 [shape = 's32[1]{0}', space=sflag, size = 0x4, scoped, tag = 'scoped memory for tpu_custom_call.1']
    #allocation5 [shape = 's32[1]{0}', space=sflag, size = 0x4, scoped, tag = 'scoped memory for tpu_custom_call.1']
    #allocation6 [shape = 'u8[512]{0}', space=smem, size = 0x200, scoped, tag = 'output window, operand 0, single buffered']
    %8 = vsyncpa [#allocation4], 0
    %9 = vsyncpa [#allocation5], 0
    // Predicated region
    $region2: #{tpu_custom_call.1} parent=1 // pred_check
      _
    $region3: #{tpu_custom_call.1} parent=1 // pred_check_branch
      %11 = sbr.rel (0) target = $region5
    $region4: #{tpu_custom_call.1} parent=1 // pred_region
      _
    $region5: #{tpu_custom_call.1} parent=1 // pred_fallthru
      _
    // Predicated region
    $region6: #{tpu_custom_call.1} parent=1 // pred_check
      _
    $region7: #{tpu_custom_call.1} parent=1 // pred_check_branch
      %13 = sbr.rel (0) target = $region9
    $region8: #{tpu_custom_call.1} parent=1 // pred_region
      %s15 = ssub.s32 128, 128
      %16 = vsyncadd [#allocation4], %s15
      %s18 = sshll.u32 [#allocation3], 4
      %s19 = int_to_ptr.vmem [resolvable:$true] %s18
      %21 = dma.hbm_to_vmem [thread:$0]  %s1, 128, %s19, [#allocation4]
    $region9: #{tpu_custom_call.1} parent=1 // pred_fallthru
      _
    // Predicated region
    $region10: #{tpu_custom_call.1} parent=1 // pred_check
      _
    $region11: #{tpu_custom_call.1} parent=1 // pred_check_branch
      %23 = sbr.rel (0) target = $region13
    $region12: #{tpu_custom_call.1} parent=1 // pred_region
      _
    $region13: #{tpu_custom_call.1} parent=1 // pred_fallthru
      _
    // Predicated region
    $region14: #{tpu_custom_call.1} parent=1 // pred_check
      _
    $region15: #{tpu_custom_call.1} parent=1 // pred_check_branch
      %25 = sbr.rel (0) target = $region17
    $region16: #{tpu_custom_call.1} parent=1 // pred_region
      %26 = dma.done [#allocation4], 128
    $region17: #{tpu_custom_call.1} parent=1 // pred_fallthru
      _
    %v27 = vld [vmem:[%s0] sm:$0xff]
    %v28 = vld [vmem:[%s2] sm:$0xff]
    %v29 = vld [vmem:[%s2 + $0x8] sm:$0xff]
    %s30 = smul.u32 0, 16
    %v31 = vlaneseq
    %v32 = vand.u32 %v31, 127
    %v33 = vstv %s30
    %v34 = vadd.s32 %v33, %v32
    %35 = vset.pattern.permute.xlu0 0
    %36 = vperm.xlu0 %35, %v27
    %v37 = vpop.permute.xlu0 %36
    %vm38 = vcmp.eq.s32.totalorder %v34, %v37
    %v39 = vsel %vm38, 1, 0
    %v40 = vcvt.s32.f32 %v39
    %vm41 = vcmask 130048
    %v43 = vsel %vm41, %v40, 0
    %45 = vmatprep.subr.mxu0 0.0
    %46 = vmatpush1.msra.mxu0 %v28
    %47 = vmatprep.subr.mxu0 0.0
    %48 = vmatpush1.msra.mxu0 %v29
    %49 = vmatprep.subr.mxu0 0.0
    %50 = vmatpush1.msra.mxu0 0.0
    %51 = vmatprep.subr.mxu0 0.0
    %52 = vmatpush1.msra.mxu0 0.0
    %53 = vmatprep.subr.mxu0 0.0
    %54 = vmatpush1.msra.mxu0 0.0
    %55 = vmatprep.subr.mxu0 0.0
    %56 = vmatpush1.msra.mxu0 0.0
    %57 = vmatprep.subr.mxu0 0.0
    %58 = vmatpush1.msra.mxu0 0.0
    %59 = vmatprep.subr.mxu0 0.0
    %60 = vmatpush1.msra.mxu0 0.0
    %61 = vmatprep.subr.mxu0 0.0
    %62 = vmatpush1.msra.mxu0 0.0
    %63 = vmatprep.subr.mxu0 0.0
    %64 = vmatpush1.msra.mxu0 0.0
    %65 = vmatprep.subr.mxu0 0.0
    %66 = vmatpush1.msra.mxu0 0.0
    %67 = vmatprep.subr.mxu0 0.0
    %68 = vmatpush1.msra.mxu0 0.0
    %69 = vmatprep.subr.mxu0 0.0
    %70 = vmatpush1.msra.mxu0 0.0
    %71 = vmatprep.subr.mxu0 0.0
    %72 = vmatpush1.msra.mxu0 0.0
    %73 = vmatprep.subr.mxu0 0.0
    %74 = vmatpush1.msra.mxu0 0.0
    %75 = vmatprep.subr.mxu0 0.0
    %76 = vmatpush1.msra.mxu0 0.0
    %77 = vmatprep.subr.mxu0 0.0
    %78 = vmatpush1.msra.mxu0 0.0
    %79 = vmatprep.subr.mxu0 0.0
    %80 = vmatpush1.msra.mxu0 0.0
    %81 = vmatprep.subr.mxu0 0.0
    %82 = vmatpush1.msra.mxu0 0.0
    %83 = vmatprep.subr.mxu0 0.0
    %84 = vmatpush1.msra.mxu0 0.0
    %85 = vmatprep.subr.mxu0 0.0
    %86 = vmatpush1.msra.mxu0 0.0
    %87 = vmatprep.subr.mxu0 0.0
    %88 = vmatpush1.msra.mxu0 0.0
    %89 = vmatprep.subr.mxu0 0.0
    %90 = vmatpush1.msra.mxu0 0.0
    %91 = vmatprep.subr.mxu0 0.0
    %92 = vmatpush1.msra.mxu0 0.0
    %93 = vmatprep.subr.mxu0 0.0
    %94 = vmatpush1.msra.mxu0 0.0
    %95 = vmatprep.subr.mxu0 0.0
    %96 = vmatpush1.msra.mxu0 0.0
    %97 = vmatprep.subr.mxu0 0.0
    %98 = vmatpush1.msra.mxu0 0.0
    %99 = vmatprep.subr.mxu0 0.0
    %100 = vmatpush1.msra.mxu0 0.0
    %101 = vmatprep.subr.mxu0 0.0
    %102 = vmatpush1.msra.mxu0 0.0
    %103 = vmatprep.subr.mxu0 0.0
    %104 = vmatpush1.msra.mxu0 0.0
    %105 = vmatprep.subr.mxu0 0.0
    %106 = vmatpush1.msra.mxu0 0.0
    %107 = vmatprep.subr.mxu0 0.0
    %108 = vmatpush1.msra.mxu0 0.0
    %109 = vmatprep.mubr.f32.mxu0 0.0
    %110 = vmatmul.mubr.f32.gmra.mrb[0].mxu0 %v43
    %v111 = vpop.f32.mrb[0].mxu0
    %v112 = vadd.f32 0.0, %v111
    %v113 = vpop.f32.mrb[0].mxu0
    %114 = vdwg.mxu0
    %p115 = scmp.eq.s32.totalorder 0, 0
    // Predicated region
    $region18: #{tpu_custom_call.1} parent=1 // pred_check
      %p116 = pneg %p115
    $region19: #{tpu_custom_call.1} parent=1 // pred_check_branch
      %118 = sbr.rel (%p116) target = $region21
    $region20: #{tpu_custom_call.1} parent=1 // pred_region
      %vm119 = vcmask 261120
      %120 = vst.msk [vmem:[#allocation2] sm:$0xff] %vm119, %v112
    $region21: #{tpu_custom_call.1} parent=1 // pred_fallthru
      _
    %p121 = scmp.gt.s32.totalorder 0, 0
    // Predicated region
    $region22: #{tpu_custom_call.1} parent=1 // pred_check
      %p122 = pneg %p121
    $region23: #{tpu_custom_call.1} parent=1 // pred_check_branch
      %124 = sbr.rel (%p122) target = $region25
    $region24: #{tpu_custom_call.1} parent=1 // pred_region
      %v125 = vld [vmem:[#allocation2] sm:$0xff]
      %v126 = vadd.f32 %v125, %v112
      %vm127 = vcmask 261120
      %128 = vst.msk [vmem:[#allocation2] sm:$0xff] %vm127, %v126
    $region25: #{tpu_custom_call.1} parent=1 // pred_fallthru
      _
    // Predicated region
    $region26: #{tpu_custom_call.1} parent=1 // pred_check
      %p129 = pneg %p115
    $region27: #{tpu_custom_call.1} parent=1 // pred_check_branch
      %131 = sbr.rel (%p129) target = $region29
    $region28: #{tpu_custom_call.1} parent=1 // pred_region
      %v132 = vld [vmem:[#allocation3] sm:$0xff]
      %v133 = vld [vmem:[#allocation2] sm:$0xff]
      %v134 = vsub.f32 %v132, %v133
      %v135 = vmul.f32 %v134, %v134
      %vm136 = vcmask 261120
      %v137 = vsel %vm136, %v135, 0.0
      %138 = vadd.xlane.f32.xlu0 %v137
      %v139 = vpop.xlane.xlu0 %138
      %s140 = smul.u32 0, 8
      %v141 = vlaneseq
      %v142 = vshrl.u32 %v141, 7
      %v143 = vstv %s140
      %v144 = vadd.s32 %v143, %v142
      %vm145 = vcmp.lt.s32.totalorder %v144, 8
      %v146 = vsel %vm145, %v139, 0.0
      %vm147 = vcmask 7168
      %v148 = vsel %vm147, %v146, 0.0
      %149 = vadd.xlane.f32.xlu0 %v148
      %v150 = vpop.xlane.xlu0 %149
      %v151 = vrot.slane %v150, 4
      %v152 = vadd.f32 %v150, %v151
      %v153 = vrot.slane %v152, 2
      %v154 = vadd.f32 %v152, %v153
      %v155 = vrot.slane %v154, 1
      %v156 = vadd.f32 %v154, %v155
      %s157 = vtos %v156
      %s158 = scalar_lea.smem [#allocation6], 0
      %159 = sst [smem:[%s158]] %s157
    $region29: #{tpu_custom_call.1} parent=1 // pred_fallthru
      _
    // Predicated region
    $region30: #{tpu_custom_call.1} parent=1 // pred_check
      _
    $region31: #{tpu_custom_call.1} parent=1 // pred_check_branch
      %161 = sbr.rel (0) target = $region33
    $region32: #{tpu_custom_call.1} parent=1 // pred_region
      %s163 = ssub.s32 16, 16
      %164 = vsyncadd [#allocation5], %s163
      %167 = dma.smem_to_hbm [#allocation6], 16, %s3, [#allocation5]
    $region33: #{tpu_custom_call.1} parent=1 // pred_fallthru
      _
    // Predicated region
    $region34: #{tpu_custom_call.1} parent=1 // pred_check
      _
    $region35: #{tpu_custom_call.1} parent=1 // pred_check_branch
      %169 = sbr.rel (0) target = $region37
    $region36: #{tpu_custom_call.1} parent=1 // pred_region
      %170 = dma.done [#allocation5], 16
    $region37: #{tpu_custom_call.1} parent=1 // pred_fallthru
      _
    %171 = sfence
    %172 = vsyncpa [#allocation4], 1
    %173 = vsyncpa [#allocation5], 1

</llo_original>
